<compile_context>
chip_gen: v6e
topology: v6e:2x2x1
jax: 0.10.0
libtpu: 0.0.40
codegen_flags: <defaults>
</compile_context>

<pallas_src>
import functools

import jax
import jax.numpy as jnp
from jax import lax
from jax.experimental import pallas as pl
from jax.experimental.pallas import tpu as pltpu


def _rmsnorm_kernel(x_ref, w_ref, o_ref, *, eps):
    # x_ref: (block_rows, d), w_ref: (1, d), o_ref: (block_rows, d)
    xf = x_ref[...].astype(jnp.float32)              # single f32 upcast (no-op for f32 in)
    wf = w_ref[...].astype(jnp.float32)              # (1, d), resident across the grid
    ms = jnp.mean(xf * xf, axis=-1, keepdims=True)   # (rows, 1)  cross-lane reduce (XLU)
    inv = lax.rsqrt(ms + eps)                        # (rows, 1)  EUP, off VALU path
    # (xf * inv) broadcasts (rows,1); then one (1,d) broadcast mul by weight.
    o_ref[...] = ((xf * inv) * wf).astype(o_ref.dtype)


def _pick_block_rows(rows, d, in_dtype, out_dtype, vmem_budget_bytes):
    """Largest row tile (multiple of sublane packing) fitting the VMEM budget."""
    in_size = jnp.dtype(in_dtype).itemsize
    out_size = jnp.dtype(out_dtype).itemsize
    # Sublane packing: 8 for 4-byte, 16 for 2-byte, 32 for 1-byte dtypes.
    packing = max(8, 32 // in_size)
    # Double-buffered input + output (BlockSpec pipelining) plus the f32
    # intermediates (upcast + product) live simultaneously in VMEM.
    bytes_per_row = d * (2 * in_size + 2 * out_size + 2 * 4)
    br = max(packing, vmem_budget_bytes // max(bytes_per_row, 1))
    br = min(br, 2048)  # diminishing returns past ~1-2k rows per step
    # No point making the tile taller than the (packing-rounded) row count.
    rows_rounded = ((rows + packing - 1) // packing) * packing
    br = min(br, rows_rounded)
    br = max(packing, (br // packing) * packing)
    return int(br)


def rmsnorm(x, weight, eps: float = 1e-5, block_rows: int | None = None,
            vmem_budget_bytes: int = 24 * 1024 * 1024):
    """x: (..., d_model); weight: (d_model,). Matches torch RMSNorm.forward."""
    orig_shape = x.shape
    d = orig_shape[-1]
    x2d = x.reshape(-1, d)
    rows = x2d.shape[0]
    out_dtype = x.dtype

    if block_rows is None:
        block_rows = _pick_block_rows(rows, d, x.dtype, out_dtype,
                                      vmem_budget_bytes)

    grid = (pl.cdiv(rows, block_rows),)   # ragged last block masked by Pallas
    w2d = weight.reshape(1, d)

    in_size = jnp.dtype(x.dtype).itemsize
    out_size = jnp.dtype(out_dtype).itemsize
    cost = pl.CostEstimate(
        flops=3 * rows * d,
        transcendentals=rows,
        bytes_accessed=rows * d * (in_size + out_size)
        + d * jnp.dtype(weight.dtype).itemsize,
    )

    kernel = functools.partial(_rmsnorm_kernel, eps=eps)

    out = pl.pallas_call(
        kernel,
        out_shape=jax.ShapeDtypeStruct((rows, d), out_dtype),
        grid_spec=pl.GridSpec(
            grid=grid,
            in_specs=[
                pl.BlockSpec((block_rows, d), lambda i: (i, 0)),
                pl.BlockSpec((1, d), lambda i: (0, 0)),   # constant -> stays in VMEM
            ],
            out_specs=pl.BlockSpec((block_rows, d), lambda i: (i, 0)),
        ),
        compiler_params=pltpu.CompilerParams(
            dimension_semantics=("parallel",),       # rows shard across v7x's 2 TCs
            vmem_limit_bytes=48 * 1024 * 1024,       # > default scoped, < v7x physical
        ),
        cost_estimate=cost,
    )(x2d, w2d)

    return out.reshape(orig_shape)


def rmsnorm_ref(x, weight, eps: float = 1e-5):
    xf = x.astype(jnp.float32)
    inv = lax.rsqrt(jnp.mean(xf * xf, axis=-1, keepdims=True) + eps)
    return (xf * inv * weight.astype(jnp.float32)).astype(x.dtype)


if __name__ == "__main__":
    key = jax.random.PRNGKey(0)

    # Main case, matching the module's expected layout: (batch, seq, d_model).
    batch, seq, d_model = 2, 8, 32
    x = jax.random.normal(key, (batch, seq, d_model), dtype=jnp.float32)
    # Deterministic parameter init, matching nn.Parameter(torch.ones(d_model)).
    weight = jnp.ones((d_model,), dtype=jnp.float32)

    out = rmsnorm(x, weight, eps=1e-5)
    out = jax.block_until_ready(out)
    ref = rmsnorm_ref(x, weight, eps=1e-5)
    assert out.shape == x.shape
    assert jnp.allclose(out, ref, atol=1e-5, rtol=1e-5), "mismatch vs reference"

    # Ragged-grid case: rows (3*5=15) not a multiple of block_rows=8 exercises
    # the pl.cdiv / masked-last-block path (no jnp.pad round-trip in HBM).
    x2 = jax.random.normal(jax.random.PRNGKey(1), (3, 5, d_model),
                           dtype=jnp.float32)
    out2 = jax.block_until_ready(rmsnorm(x2, weight, eps=1e-5, block_rows=8))
    ref2 = rmsnorm_ref(x2, weight, eps=1e-5)
    assert out2.shape == x2.shape
    assert jnp.allclose(out2, ref2, atol=1e-5, rtol=1e-5), "ragged mismatch"

    # Lane-dense production-style case: d_model multiple of 128, bf16 input.
    x3 = jax.random.normal(jax.random.PRNGKey(2), (4, 16, 256),
                           dtype=jnp.bfloat16)
    w3 = jnp.ones((256,), dtype=jnp.float32)
    out3 = jax.block_until_ready(rmsnorm(x3, w3, eps=1e-5))
    ref3 = rmsnorm_ref(x3, w3, eps=1e-5)
    assert out3.shape == x3.shape
    assert jnp.allclose(out3.astype(jnp.float32), ref3.astype(jnp.float32),
                        atol=2e-2, rtol=2e-2), "bf16 mismatch"

    print("KERNEL_OK")
</pallas_src>

<mosaic_0001>
module attributes {stable_mosaic.version = 11 : i64} {
  func.func @_rmsnorm_kernel(%arg0: i32, %arg1: memref<16x32xf32, #tpu.memory_space<vmem>>, %arg2: memref<1x32xf32, #tpu.memory_space<vmem>>, %arg3: memref<16x32xf32, #tpu.memory_space<vmem>>) attributes {dimension_semantics = [#tpu.dimension_semantics<parallel>], iteration_bounds = array<i64: 1>, scalar_prefetch = 0 : i64, scratch_operands = 0 : i64, tpu.core_type = #tpu.core_type<tc>, window_params = [{transform_indices = @transform_0, window_bounds = array<i64: 16, 32>}, {pipeline_mode = #tpu.pipeline_mode<synchronous>, transform_indices = @transform_1, window_bounds = array<i64: 1, 32>}, {transform_indices = @transform_2, window_bounds = array<i64: 16, 32>}]} {
    %c0 = arith.constant 0 : index
    %c0_0 = arith.constant 0 : index
    %0 = vector.load %arg1[%c0, %c0_0] : memref<16x32xf32, #tpu.memory_space<vmem>>, vector<16x32xf32>
    %c0_1 = arith.constant 0 : index
    %c0_2 = arith.constant 0 : index
    %1 = vector.load %arg2[%c0_1, %c0_2] : memref<1x32xf32, #tpu.memory_space<vmem>>, vector<1x32xf32>
    %2 = arith.mulf %0, %0 : vector<16x32xf32>
    %cst = arith.constant dense<0.000000e+00> : vector<16xf32>
    %3 = vector.multi_reduction <add>, %2, %cst [1] : vector<16x32xf32> to vector<16xf32>
    %4 = vector.shape_cast %3 : vector<16xf32> to vector<16x1xf32>
    %cst_3 = arith.constant 3.200000e+01 : f32
    %5 = vector.broadcast %cst_3 : f32 to vector<16x1xf32>
    %6 = arith.divf %4, %5 : vector<16x1xf32>
    %cst_4 = arith.constant 9.99999974E-6 : f32
    %7 = vector.broadcast %cst_4 : f32 to vector<16x1xf32>
    %8 = arith.addf %6, %7 : vector<16x1xf32>
    %9 = math.rsqrt %8 : vector<16x1xf32>
    %10 = vector.broadcast %9 : vector<16x1xf32> to vector<16x32xf32>
    %11 = arith.mulf %0, %10 : vector<16x32xf32>
    %12 = vector.broadcast %1 : vector<1x32xf32> to vector<16x32xf32>
    %13 = arith.mulf %11, %12 : vector<16x32xf32>
    %c0_5 = arith.constant 0 : index
    %c0_6 = arith.constant 0 : index
    %14 = vector.load %arg3[%c0_5, %c0_6] : memref<16x32xf32, #tpu.memory_space<vmem>>, vector<16x32xf32>
    tpu.vector_store %arg3[%c0_5, %c0_6], %13 {strides = array<i32>} : memref<16x32xf32, #tpu.memory_space<vmem>>, vector<16x32xf32>,
    return
  }
  func.func @transform_0(%arg0: i32) -> (i32, i32) {
    %c0_i32 = arith.constant 0 : i32
    %c0_i32_0 = arith.constant 0 : i32
    return %arg0, %c0_i32 : i32, i32
  }
  func.func @transform_1(%arg0: i32) -> (i32, i32) {
    %c0_i32 = arith.constant 0 : i32
    %c0_i32_0 = arith.constant 0 : i32
    %c0_i32_1 = arith.constant 0 : i32
    return %c0_i32, %c0_i32_0 : i32, i32
  }
  func.func @transform_2(%arg0: i32) -> (i32, i32) {
    %c0_i32 = arith.constant 0 : i32
    %c0_i32_0 = arith.constant 0 : i32
    return %arg0, %c0_i32 : i32, i32
  }
}

</mosaic_0001>

<llo_original>
// kernel: tpu_custom_call.1
$region0: #{tpu_custom_call.1}
  #allocation0 [shape = 'u32[]', space=smem, size = 0x4, offset = 0x4, fixed_abs, tag = 'smem constant byte address 0x4 - core index']
  #allocation1 [shape = 'u32[144,128]{1,0:T(1,128)}', space=vmem, size = 0x12000, scoped, tag = 'internal scratch']
  %s0 = inlined_call_operand.hbm [shape: f32[16,32], index: 0, kind: input, shape index: {}]
  %s1 = inlined_call_operand.vmem [shape: f32[1,32], index: 1, kind: input, shape index: {}]
  %s2 = inlined_call_operand.hbm [shape: f32[16,32], index: 2, kind: output, shape index: {}]
  %s3 = sld [smem:[#allocation0]]
  $region22: #{tpu_custom_call.1} parent=0
    _
  %s5 = ssub.s32 1, %s3
  %s6 = scalar_select 0, %s5, %s3
  $region1: #{tpu_custom_call.1} parent=0
    #allocation2 [shape = 'u8[8192]{0}', space=vmem, size = 0x2000, scoped, tag = 'input window, operand 0, single buffered']
    #allocation3 [shape = 's32[1]{0}', space=sflag, size = 0x4, scoped, tag = 'scoped memory for tpu_custom_call.1']
    #allocation4 [shape = 's32[1]{0}', space=sflag, size = 0x4, scoped, tag = 'scoped memory for tpu_custom_call.1']
    #allocation5 [shape = 'u8[8192]{0}', space=vmem, size = 0x2000, scoped, tag = 'output window, operand 0, single buffered']
    %7 = vsyncpa [#allocation3], 0
    %8 = vsyncpa [#allocation4], 0
    // Predicated region
    $region2: #{tpu_custom_call.1} parent=1 // pred_check
      _
    $region3: #{tpu_custom_call.1} parent=1 // pred_check_branch
      %10 = sbr.rel (0) target = $region5
    $region4: #{tpu_custom_call.1} parent=1 // pred_region
      %s12 = ssub.s32 256, 256
      %13 = vsyncadd [#allocation3], %s12
      %s14 = sshll.u32 [#allocation2], 4
      %s15 = int_to_ptr.vmem [resolvable:$true] %s14
      %20 = dma.hbm_to_vmem [thread:$0]  %s0, 256, %s15, [#allocation3], 128, 128, 8
    $region5: #{tpu_custom_call.1} parent=1 // pred_fallthru
      _
    // Predicated region
    $region6: #{tpu_custom_call.1} parent=1 // pred_check
      _
    $region7: #{tpu_custom_call.1} parent=1 // pred_check_branch
      %22 = sbr.rel (0) target = $region9
    $region8: #{tpu_custom_call.1} parent=1 // pred_region
      _
    $region9: #{tpu_custom_call.1} parent=1 // pred_fallthru
      _
    // Predicated region
    $region10: #{tpu_custom_call.1} parent=1 // pred_check
      _
    $region11: #{tpu_custom_call.1} parent=1 // pred_check_branch
      %24 = sbr.rel (0) target = $region13
    $region12: #{tpu_custom_call.1} parent=1 // pred_region
      %25 = dma.done [#allocation3], 256
    $region13: #{tpu_custom_call.1} parent=1 // pred_fallthru
      _
    %v26 = vld [vmem:[#allocation2] sm:$0xff]
    %v27 = vld [vmem:[#allocation2 + $0x8] sm:$0xff]
    %v28 = vld [vmem:[%s1] sm:$0x1]
    %v29 = vmul.f32 %v26, %v26
    %v30 = vmul.f32 %v27, %v27
    %vm31 = vcmask 261120
    %v32 = vsel %vm31, %v29, 0.0
    %33 = vadd.xlane.f32.xlu0 %v32
    %v34 = vpop.xlane.xlu0 %33
    %v35 = vsel %vm31, %v30, 0.0
    %36 = vadd.xlane.f32.xlu0 %v35
    %v37 = vpop.xlane.xlu0 %36
    %v38 = vrcp.pop 32.0
    %v39 = vmul.f32 %v34, %v38
    %v40 = vmul.f32 %v37, %v38
    %v41 = vadd.f32 %v39, 1e-05
    %v42 = vadd.f32 %v40, 1e-05
    %v43 = vrsqrt.pop %v41
    %v44 = vrsqrt.pop %v42
    %v45 = vmul.f32 %v26, %v43
    %v46 = vmul.f32 %v27, %v44
    %v48 = vlaneseq
    %v49 = vshrl.u32 %v48, 7
    %v50 = vsub.s32 0, %v49
    %v51 = vrot.slane %v28, %v50
    %v53 = vmul.f32 %v45, %v51
    %v54 = vmul.f32 %v46, %v51
    %55 = vst.msk [vmem:[#allocation5] sm:$0xff] %vm31, %v53
    %56 = vst.msk [vmem:[#allocation5 + $0x8] sm:$0xff] %vm31, %v54
    // Predicated region
    $region14: #{tpu_custom_call.1} parent=1 // pred_check
      _
    $region15: #{tpu_custom_call.1} parent=1 // pred_check_branch
      %58 = sbr.rel (0) target = $region17
    $region16: #{tpu_custom_call.1} parent=1 // pred_region
      %s60 = ssub.s32 256, 256
      %61 = vsyncadd [#allocation4], %s60
      %s62 = sshll.u32 [#allocation5], 4
      %s63 = int_to_ptr.vmem [resolvable:$true] %s62
      %68 = dma.vmem_to_hbm [thread:$0]  %s63, 256, %s2, [#allocation4], 128, 128, 8
    $region17: #{tpu_custom_call.1} parent=1 // pred_fallthru
      _
    // Predicated region
    $region18: #{tpu_custom_call.1} parent=1 // pred_check
      _
    $region19: #{tpu_custom_call.1} parent=1 // pred_check_branch
      %70 = sbr.rel (0) target = $region21
    $region20: #{tpu_custom_call.1} parent=1 // pred_region
      %71 = dma.done [#allocation4], 256
    $region21: #{tpu_custom_call.1} parent=1 // pred_fallthru
      _
    %72 = vsyncpa [#allocation3], 1
    %73 = vsyncpa [#allocation4], 1

</llo_original>
